<compile_context>
chip_gen: v7x
topology: tpu7x:2x2x1
jax: 0.10.0
libtpu: 0.0.40
codegen_flags: <defaults>
</compile_context>

<pallas_src>
import numpy as np
import jax
import jax.numpy as jnp
from jax.experimental import pallas as pl
from jax.experimental.pallas import tpu as pltpu

BN_EPS = 1e-5


def critic_kernel(state_ref, action_ref, w1_ref, w2_ref, pack_ref, out_ref):
    state = state_ref[...]            # (B, S)
    action = action_ref[...]          # (B, A)

    fc1 = w1_ref.shape[1]
    fc2 = w2_ref.shape[1]

    # Packed parameter slab rows: [b1; gamma; beta; b2; w3_row; b3; 0; 0]
    b1 = pack_ref[0:1, 0:fc1]         # (1, fc1)
    gamma = pack_ref[1:2, 0:fc1]
    beta = pack_ref[2:3, 0:fc1]
    b2 = pack_ref[3:4, 0:fc2]         # (1, fc2)
    w3_row = pack_ref[4:5, 0:fc2]     # (1, fc2)
    b3 = pack_ref[5:6, 0:1]           # (1, 1)

    # --- fc1 + relu -------------------------------------------------------
    x = jnp.dot(state, w1_ref[...], preferred_element_type=jnp.float32)
    x = jnp.maximum(x + b1, 0.0)

    # --- BatchNorm1d (training mode: biased batch statistics) -------------
    mean = jnp.mean(x, axis=0, keepdims=True)
    diff = x - mean
    var = jnp.mean(diff * diff, axis=0, keepdims=True)
    # fold gamma into the rsqrt so the (B, fc1)-sized multiply happens once
    scale = gamma * jax.lax.rsqrt(var + BN_EPS)          # (1, fc1) row
    x = diff * scale + beta

    # --- fc2 on concat([x, action]) == x @ W2[:fc1] + action @ W2[fc1:] ---
    w2x = w2_ref[0:fc1, :]            # fc1 is a multiple of 8 -> aligned view
    w2a = w2_ref[fc1:, :]
    h = jnp.dot(x, w2x, preferred_element_type=jnp.float32)
    h = h + jnp.dot(action, w2a, preferred_element_type=jnp.float32)
    h = jnp.maximum(h + b2, 0.0)

    # --- fc3: single output column, emitted lane-dense as (1, B) -----------
    # q[0, b] = sum_j w3_row[0, j] * h[b, j]   (q @ k^T-style contraction,
    # batch lands on lanes -> unmasked store, no relayout needed)
    q = jax.lax.dot_general(
        w3_row, h,
        dimension_numbers=(((1,), (1,)), ((), ())),
        preferred_element_type=jnp.float32)               # (1, B)
    out_ref[...] = q + b3


@jax.jit
def critic_forward(state, action, params):
    B, S = state.shape
    A = action.shape[1]
    w1 = params["w1"]          # (S, fc1)
    w2 = params["w2"]          # (fc1 + A, fc2)
    pack = params["pack"]      # (8, max(fc1, fc2))
    fc1 = w1.shape[1]
    fc2 = w2.shape[1]

    flops = 2 * B * (S * fc1 + (fc1 + A) * fc2 + fc2)
    bytes_accessed = 4 * (state.size + action.size + w1.size + w2.size
                          + pack.size + B)
    cost = pl.CostEstimate(flops=int(flops),
                           transcendentals=int(fc1),          # rsqrt row
                           bytes_accessed=int(bytes_accessed))

    vmem = pl.BlockSpec(memory_space=pltpu.MemorySpace.VMEM)
    q_row = pl.pallas_call(
        critic_kernel,
        out_shape=jax.ShapeDtypeStruct((1, B), jnp.float32),  # lane-dense Q
        in_specs=[vmem] * 5,
        out_specs=vmem,
        cost_estimate=cost,
    )(state, action, w1, w2, pack)
    # Module contract is (B, 1); cheap XLA transpose outside the kernel.
    return q_row.T


def init_params(key, state_size, action_size, fc1_units, fc2_units):
    """Deterministic synthetic init mirroring the PyTorch module's shapes.
    Weights stored as (in, out) (transposed vs. nn.Linear); all per-layer row
    vectors packed into a single (8, max(fc1, fc2)) slab to minimize kernel
    input DMAs. fc1_units must be a multiple of 8 (tile-aligned W2 split)."""
    assert fc1_units % 8 == 0, "keep the W2 split offset sublane-aligned"
    ks = jax.random.split(key, 7)

    def uniform(k, shape, lim):
        return jax.random.uniform(k, shape, jnp.float32, minval=-lim, maxval=lim)

    lim1 = 1.0 / np.sqrt(fc1_units)    # hidden_init uses weight.size()[0] = out
    lim2 = 1.0 / np.sqrt(fc2_units)

    w1 = uniform(ks[0], (state_size, fc1_units), lim1)
    b1 = uniform(ks[1], (fc1_units,), 1.0 / np.sqrt(state_size))
    gamma = jnp.ones((fc1_units,), jnp.float32)     # BatchNorm1d affine init
    beta = jnp.zeros((fc1_units,), jnp.float32)

    w2x = uniform(ks[2], (fc1_units, fc2_units), lim2)
    w2a = uniform(ks[3], (action_size, fc2_units), lim2)
    b2 = uniform(ks[4], (fc2_units,), 1.0 / np.sqrt(fc1_units + action_size))
    w3_row = uniform(ks[5], (fc2_units,), 0.003)    # fc3 weight as a row
    b3 = uniform(ks[6], (), 1.0 / np.sqrt(fc2_units))

    pad = max(fc1_units, fc2_units)
    pack = jnp.zeros((8, pad), jnp.float32)
    pack = pack.at[0, :fc1_units].set(b1)
    pack = pack.at[1, :fc1_units].set(gamma)
    pack = pack.at[2, :fc1_units].set(beta)
    pack = pack.at[3, :fc2_units].set(b2)
    pack = pack.at[4, :fc2_units].set(w3_row)
    pack = pack.at[5, 0].set(b3)

    return {
        "w1": w1,
        "w2": jnp.concatenate([w2x, w2a], axis=0),   # (fc1+A, fc2)
        "pack": pack,                                # (8, max(fc1, fc2))
    }


def critic_reference(state, action, p):
    """Pure-JAX reference of the PyTorch forward (training-mode BN)."""
    w1, w2, pack = p["w1"], p["w2"], p["pack"]
    fc1 = w1.shape[1]
    fc2 = w2.shape[1]
    b1 = pack[0, :fc1]
    gamma = pack[1, :fc1]
    beta = pack[2, :fc1]
    b2 = pack[3, :fc2]
    w3 = pack[4, :fc2]
    b3 = pack[5, 0]

    x = jnp.maximum(state @ w1 + b1, 0.0)
    mean = jnp.mean(x, axis=0, keepdims=True)
    var = jnp.mean((x - mean) ** 2, axis=0, keepdims=True)
    x = (x - mean) / jnp.sqrt(var + BN_EPS) * gamma + beta
    xa = jnp.concatenate([x, action], axis=1)
    h = jnp.maximum(xa @ w2 + b2, 0.0)
    return h @ w3[:, None] + b3


if __name__ == "__main__":
    # Small shapes consistent with the module's forward:
    B, state_size, action_size = 8, 32, 8
    fc1_units, fc2_units = 64, 48

    key = jax.random.PRNGKey(0)
    k_state, k_action, k_params = jax.random.split(key, 3)

    state = jax.random.normal(k_state, (B, state_size), jnp.float32)
    action = jax.random.normal(k_action, (B, action_size), jnp.float32)
    params = init_params(k_params, state_size, action_size, fc1_units, fc2_units)

    q = critic_forward(state, action, params)
    q = jax.block_until_ready(q)

    q_ref = critic_reference(state, action, params)
    np.testing.assert_allclose(np.asarray(q), np.asarray(q_ref),
                               rtol=5e-5, atol=5e-5)
    assert q.shape == (B, 1)

    print("KERNEL_OK")
</pallas_src>

<mosaic_0001>
module attributes {stable_mosaic.version = 11 : i64} {
  func.func @critic_kernel(%arg0: memref<8x32xf32, #tpu.memory_space<vmem>>, %arg1: memref<8x8xf32, #tpu.memory_space<vmem>>, %arg2: memref<32x64xf32, #tpu.memory_space<vmem>>, %arg3: memref<72x48xf32, #tpu.memory_space<vmem>>, %arg4: memref<8x64xf32, #tpu.memory_space<vmem>>, %arg5: memref<1x8xf32, #tpu.memory_space<vmem>>) attributes {dimension_semantics = [], scalar_prefetch = 0 : i64, scratch_operands = 0 : i64, tpu.core_type = #tpu.core_type<tc>} {
    %c0 = arith.constant 0 : index
    %c0_0 = arith.constant 0 : index
    %0 = vector.load %arg0[%c0, %c0_0] : memref<8x32xf32, #tpu.memory_space<vmem>>, vector<8x32xf32>
    %c0_1 = arith.constant 0 : index
    %c0_2 = arith.constant 0 : index
    %1 = vector.load %arg1[%c0_1, %c0_2] : memref<8x8xf32, #tpu.memory_space<vmem>>, vector<8x8xf32>
    %c0_3 = arith.constant 0 : index
    %c0_4 = arith.constant 0 : index
    %2 = vector.load %arg4[%c0_3, %c0_4] : memref<8x64xf32, #tpu.memory_space<vmem>>, vector<1x64xf32>
    %c1 = arith.constant 1 : index
    %c0_5 = arith.constant 0 : index
    %3 = vector.load %arg4[%c1, %c0_5] : memref<8x64xf32, #tpu.memory_space<vmem>>, vector<1x64xf32>
    %c2 = arith.constant 2 : index
    %c0_6 = arith.constant 0 : index
    %4 = vector.load %arg4[%c2, %c0_6] : memref<8x64xf32, #tpu.memory_space<vmem>>, vector<1x64xf32>
    %c3 = arith.constant 3 : index
    %c0_7 = arith.constant 0 : index
    %5 = vector.load %arg4[%c3, %c0_7] : memref<8x64xf32, #tpu.memory_space<vmem>>, vector<1x48xf32>
    %c4 = arith.constant 4 : index
    %c0_8 = arith.constant 0 : index
    %6 = vector.load %arg4[%c4, %c0_8] : memref<8x64xf32, #tpu.memory_space<vmem>>, vector<1x48xf32>
    %c5 = arith.constant 5 : index
    %c0_9 = arith.constant 0 : index
    %7 = vector.load %arg4[%c5, %c0_9] : memref<8x64xf32, #tpu.memory_space<vmem>>, vector<1x1xf32>
    %c0_10 = arith.constant 0 : index
    %c0_11 = arith.constant 0 : index
    %8 = vector.load %arg2[%c0_10, %c0_11] : memref<32x64xf32, #tpu.memory_space<vmem>>, vector<32x64xf32>
    %cst = arith.constant dense<0.000000e+00> : vector<8x64xf32>
    %9 = tpu.matmul %0, %8, %cst {dimension_numbers = #tpu.dot_dimension_numbers<[1], [0], [0], [1], [0, 0, 1, 1], [], []>} : vector<8x32xf32>, vector<32x64xf32>, vector<8x64xf32> -> vector<8x64xf32>
    %10 = vector.broadcast %2 : vector<1x64xf32> to vector<8x64xf32>
    %11 = arith.addf %9, %10 : vector<8x64xf32>
    %cst_12 = arith.constant 0.000000e+00 : f32
    %12 = vector.broadcast %cst_12 : f32 to vector<8x64xf32>
    %13 = arith.maximumf %11, %12 : vector<8x64xf32>
    %cst_13 = arith.constant dense<0.000000e+00> : vector<64xf32>
    %14 = vector.multi_reduction <add>, %13, %cst_13 [0] : vector<8x64xf32> to vector<64xf32>
    %15 = vector.shape_cast %14 : vector<64xf32> to vector<1x64xf32>
    %cst_14 = arith.constant 8.000000e+00 : f32
    %16 = vector.broadcast %cst_14 : f32 to vector<1x64xf32>
    %17 = arith.divf %15, %16 : vector<1x64xf32>
    %18 = vector.broadcast %17 : vector<1x64xf32> to vector<8x64xf32>
    %19 = arith.subf %13, %18 : vector<8x64xf32>
    %20 = arith.mulf %19, %19 : vector<8x64xf32>
    %cst_15 = arith.constant dense<0.000000e+00> : vector<64xf32>
    %21 = vector.multi_reduction <add>, %20, %cst_15 [0] : vector<8x64xf32> to vector<64xf32>
    %22 = vector.shape_cast %21 : vector<64xf32> to vector<1x64xf32>
    %cst_16 = arith.constant 8.000000e+00 : f32
    %23 = vector.broadcast %cst_16 : f32 to vector<1x64xf32>
    %24 = arith.divf %22, %23 : vector<1x64xf32>
    %cst_17 = arith.constant 9.99999974E-6 : f32
    %25 = vector.broadcast %cst_17 : f32 to vector<1x64xf32>
    %26 = arith.addf %24, %25 : vector<1x64xf32>
    %27 = math.rsqrt %26 : vector<1x64xf32>
    %28 = arith.mulf %3, %27 : vector<1x64xf32>
    %29 = vector.broadcast %28 : vector<1x64xf32> to vector<8x64xf32>
    %30 = arith.mulf %19, %29 : vector<8x64xf32>
    %31 = vector.broadcast %4 : vector<1x64xf32> to vector<8x64xf32>
    %32 = arith.addf %30, %31 : vector<8x64xf32>
    %c0_18 = arith.constant 0 : index
    %c0_19 = arith.constant 0 : index
    %33 = vector.load %arg3[%c0_18, %c0_19] : memref<72x48xf32, #tpu.memory_space<vmem>>, vector<64x48xf32>
    %c64 = arith.constant 64 : index
    %c0_20 = arith.constant 0 : index
    %34 = vector.load %arg3[%c64, %c0_20] : memref<72x48xf32, #tpu.memory_space<vmem>>, vector<8x48xf32>
    %cst_21 = arith.constant dense<0.000000e+00> : vector<8x48xf32>
    %35 = tpu.matmul %32, %33, %cst_21 {dimension_numbers = #tpu.dot_dimension_numbers<[1], [0], [0], [1], [0, 0, 1, 1], [], []>} : vector<8x64xf32>, vector<64x48xf32>, vector<8x48xf32> -> vector<8x48xf32>
    %cst_22 = arith.constant dense<0.000000e+00> : vector<8x48xf32>
    %36 = tpu.matmul %1, %34, %cst_22 {dimension_numbers = #tpu.dot_dimension_numbers<[1], [0], [0], [1], [0, 0, 1, 1], [], []>} : vector<8x8xf32>, vector<8x48xf32>, vector<8x48xf32> -> vector<8x48xf32>
    %37 = arith.addf %35, %36 : vector<8x48xf32>
    %38 = vector.broadcast %5 : vector<1x48xf32> to vector<8x48xf32>
    %39 = arith.addf %37, %38 : vector<8x48xf32>
    %cst_23 = arith.constant 0.000000e+00 : f32
    %40 = vector.broadcast %cst_23 : f32 to vector<8x48xf32>
    %41 = arith.maximumf %39, %40 : vector<8x48xf32>
    %cst_24 = arith.constant dense<0.000000e+00> : vector<1x8xf32>
    %42 = tpu.matmul %6, %41, %cst_24 {dimension_numbers = #tpu.dot_dimension_numbers<[1], [1], [0], [0], [0, 0, 1, 0], [], []>} : vector<1x48xf32>, vector<8x48xf32>, vector<1x8xf32> -> vector<1x8xf32>
    %43 = vector.broadcast %7 : vector<1x1xf32> to vector<1x8xf32>
    %44 = arith.addf %42, %43 : vector<1x8xf32>
    %c0_25 = arith.constant 0 : index
    %c0_26 = arith.constant 0 : index
    %45 = vector.load %arg5[%c0_25, %c0_26] : memref<1x8xf32, #tpu.memory_space<vmem>>, vector<1x8xf32>
    tpu.vector_store %arg5[%c0_25, %c0_26], %44 {strides = array<i32>} : memref<1x8xf32, #tpu.memory_space<vmem>>, vector<1x8xf32>,
    return
  }
}

</mosaic_0001>

<llo_original>
// kernel: critic_forward.1
$region0: #{critic_forward.1}
  #allocation0 [shape = 'u32[]', space=smem, size = 0x4, offset = 0x4, fixed_abs, tag = 'smem constant byte address 0x4 - core index']
  #allocation1 [shape = 'u32[144,128]{1,0:T(1,128)}', space=vmem, size = 0x12000, scoped, tag = 'internal scratch']
  %s0 = inlined_call_operand.vmem [shape: f32[8,32], index: 0, kind: input, shape index: {}]
  %s1 = inlined_call_operand.vmem [shape: f32[8,8], index: 1, kind: input, shape index: {}]
  %s2 = inlined_call_operand.vmem [shape: f32[32,64], index: 2, kind: input, shape index: {}]
  %s3 = inlined_call_operand.vmem [shape: f32[72,48], index: 3, kind: input, shape index: {}]
  %s4 = inlined_call_operand.vmem [shape: f32[8,64], index: 4, kind: input, shape index: {}]
  %s5 = inlined_call_operand.hbm [shape: f32[1,8], index: 5, kind: output, shape index: {}]
  %s6 = sld [smem:[#allocation0]]
  $region30: #{critic_forward.1} parent=0
    _
  %s8 = ssub.s32 1, %s6
  %s9 = scalar_select 0, %s8, %s6
  $region1: #{critic_forward.1} parent=0
    #allocation2 [shape = 'u8[512]{0}', space=vmem, size = 0x400, scoped, tag = 'output window, operand 0, single buffered']
    #allocation3 [shape = 's32[1]{0}', space=sflag, size = 0x4, scoped, tag = 'scoped memory for critic_forward.1']
    %10 = vsyncpa [#allocation3], 0
    // Predicated region
    $region2: #{critic_forward.1} parent=1 // pred_check
      _
    $region3: #{critic_forward.1} parent=1 // pred_check_branch
      %12 = sbr.rel (0) target = $region5
    $region4: #{critic_forward.1} parent=1 // pred_region
      _
    $region5: #{critic_forward.1} parent=1 // pred_fallthru
      _
    // Predicated region
    $region6: #{critic_forward.1} parent=1 // pred_check
      _
    $region7: #{critic_forward.1} parent=1 // pred_check_branch
      %14 = sbr.rel (0) target = $region9
    $region8: #{critic_forward.1} parent=1 // pred_region
      _
    $region9: #{critic_forward.1} parent=1 // pred_fallthru
      _
    // Predicated region
    $region10: #{critic_forward.1} parent=1 // pred_check
      _
    $region11: #{critic_forward.1} parent=1 // pred_check_branch
      %16 = sbr.rel (0) target = $region13
    $region12: #{critic_forward.1} parent=1 // pred_region
      _
    $region13: #{critic_forward.1} parent=1 // pred_fallthru
      _
    // Predicated region
    $region14: #{critic_forward.1} parent=1 // pred_check
      _
    $region15: #{critic_forward.1} parent=1 // pred_check_branch
      %18 = sbr.rel (0) target = $region17
    $region16: #{critic_forward.1} parent=1 // pred_region
      _
    $region17: #{critic_forward.1} parent=1 // pred_fallthru
      _
    // Predicated region
    $region18: #{critic_forward.1} parent=1 // pred_check
      _
    $region19: #{critic_forward.1} parent=1 // pred_check_branch
      %20 = sbr.rel (0) target = $region21
    $region20: #{critic_forward.1} parent=1 // pred_region
      _
    $region21: #{critic_forward.1} parent=1 // pred_fallthru
      _
    %v21 = vld [vmem:[%s0] sm:$0xff]
    %v22 = vld [vmem:[%s1] sm:$0xff]
    %v23 = vld [vmem:[%s4] sm:$0x1]
    %v24 = vld [vmem:[%s4 + $0x1] sm:$0x1]
    %v25 = vld [vmem:[%s4 + $0x2] sm:$0x1]
    %v26 = vld [vmem:[%s4 + $0x3] sm:$0x1]
    %v27 = vld [vmem:[%s4 + $0x4] sm:$0x1]
    %v28 = vld [vmem:[%s4 + $0x5] sm:$0x1]
    %v29 = vld [vmem:[%s2] sm:$0xff]
    %v30 = vld [vmem:[%s2 + $0x8] sm:$0xff]
    %v31 = vld [vmem:[%s2 + $0x10] sm:$0xff]
    %v32 = vld [vmem:[%s2 + $0x18] sm:$0xff]
    %v33 = vlaneseq
    %v34 = vshrl.u32 %v33, 7
    %v35 = vsub.s32 0, %v34
    %v36 = vrot.slane %v23, %v35
    %vm37 = vcmask 261120
    %v39 = vsel %vm37, %v21, 0
    %41 = vmatprep.subr.mxu0 0.0
    %42 = vmatpush1.msra.mxu0 %v29
    %43 = vmatprep.subr.mxu0 0.0
    %44 = vmatpush1.msra.mxu0 %v30
    %45 = vmatprep.subr.mxu0 0.0
    %46 = vmatpush1.msra.mxu0 %v31
    %47 = vmatprep.subr.mxu0 0.0
    %48 = vmatpush1.msra.mxu0 %v32
    %49 = vmatprep.subr.mxu0 0.0
    %50 = vmatpush1.msra.mxu0 0.0
    %51 = vmatprep.subr.mxu0 0.0
    %52 = vmatpush1.msra.mxu0 0.0
    %53 = vmatprep.subr.mxu0 0.0
    %54 = vmatpush1.msra.mxu0 0.0
    %55 = vmatprep.subr.mxu0 0.0
    %56 = vmatpush1.msra.mxu0 0.0
    %57 = vmatprep.subr.mxu0 0.0
    %58 = vmatpush1.msra.mxu0 0.0
    %59 = vmatprep.subr.mxu0 0.0
    %60 = vmatpush1.msra.mxu0 0.0
    %61 = vmatprep.subr.mxu0 0.0
    %62 = vmatpush1.msra.mxu0 0.0
    %63 = vmatprep.subr.mxu0 0.0
    %64 = vmatpush1.msra.mxu0 0.0
    %65 = vmatprep.subr.mxu0 0.0
    %66 = vmatpush1.msra.mxu0 0.0
    %67 = vmatprep.subr.mxu0 0.0
    %68 = vmatpush1.msra.mxu0 0.0
    %69 = vmatprep.subr.mxu0 0.0
    %70 = vmatpush1.msra.mxu0 0.0
    %71 = vmatprep.subr.mxu0 0.0
    %72 = vmatpush1.msra.mxu0 0.0
    %73 = vmatprep.subr.mxu0 0.0
    %74 = vmatpush1.msra.mxu0 0.0
    %75 = vmatprep.subr.mxu0 0.0
    %76 = vmatpush1.msra.mxu0 0.0
    %77 = vmatprep.subr.mxu0 0.0
    %78 = vmatpush1.msra.mxu0 0.0
    %79 = vmatprep.subr.mxu0 0.0
    %80 = vmatpush1.msra.mxu0 0.0
    %81 = vmatprep.subr.mxu0 0.0
    %82 = vmatpush1.msra.mxu0 0.0
    %83 = vmatprep.subr.mxu0 0.0
    %84 = vmatpush1.msra.mxu0 0.0
    %85 = vmatprep.subr.mxu0 0.0
    %86 = vmatpush1.msra.mxu0 0.0
    %87 = vmatprep.subr.mxu0 0.0
    %88 = vmatpush1.msra.mxu0 0.0
    %89 = vmatprep.subr.mxu0 0.0
    %90 = vmatpush1.msra.mxu0 0.0
    %91 = vmatprep.subr.mxu0 0.0
    %92 = vmatpush1.msra.mxu0 0.0
    %93 = vmatprep.subr.mxu0 0.0
    %94 = vmatpush1.msra.mxu0 0.0
    %95 = vmatprep.subr.mxu0 0.0
    %96 = vmatpush1.msra.mxu0 0.0
    %97 = vmatprep.subr.mxu0 0.0
    %98 = vmatpush1.msra.mxu0 0.0
    %99 = vmatprep.subr.mxu0 0.0
    %100 = vmatpush1.msra.mxu0 0.0
    %101 = vmatprep.subr.mxu0 0.0
    %102 = vmatpush1.msra.mxu0 0.0
    %103 = vmatprep.subr.mxu0 0.0
    %104 = vmatpush1.msra.mxu0 0.0
    %105 = vmatprep.mubr.f32.mxu0 0.0
    %106 = vmatmul.mubr.f32.gmra.mrb[0].mxu0 %v39
    %v107 = vpop.f32.mrb[0].mxu0
    %v108 = vadd.f32 %v36, %v107
    %v109 = vpop.f32.mrb[0].mxu0
    %110 = vdwg.mxu0
    %v111 = vmax.f32 %v108, 0.0
    %vm112 = vcmask 523264
    %v113 = vsel %vm112, %v111, 0.0
    %v114 = vrot.slane %v113, 4
    %v115 = vadd.f32 %v113, %v114
    %v116 = vrot.slane %v115, 2
    %v117 = vadd.f32 %v115, %v116
    %v118 = vrot.slane %v117, 1
    %v119 = vadd.f32 %v117, %v118
    %v120 = vrcp.pop 8.0
    %v121 = vmul.f32 %v119, %v120
    %v122 = vsub.f32 %v111, %v121
    %v123 = vmul.f32 %v122, %v122
    %v124 = vsel %vm112, %v123, 0.0
    %v125 = vrot.slane %v124, 4
    %v126 = vadd.f32 %v124, %v125
    %v127 = vrot.slane %v126, 2
    %v128 = vadd.f32 %v126, %v127
    %v129 = vrot.slane %v128, 1
    %v130 = vadd.f32 %v128, %v129
    %v131 = vmul.f32 %v130, %v120
    %v132 = vadd.f32 %v131, 1e-05
    %v133 = vrsqrt.pop %v132
    %v134 = vmul.f32 %v24, %v133
    %v135 = vlaneseq
    %v136 = vshrl.u32 %v135, 7
    %v137 = vsub.s32 0, %v136
    %v138 = vrot.slane %v134, %v137
    %v139 = vmul.f32 %v122, %v138
    %v140 = vlaneseq
    %v141 = vshrl.u32 %v140, 7
    %v142 = vsub.s32 0, %v141
    %v143 = vrot.slane %v25, %v142
    %v144 = vadd.f32 %v139, %v143
    %v145 = vld [vmem:[%s3] sm:$0xff]
    %v146 = vld [vmem:[%s3 + $0x8] sm:$0xff]
    %v147 = vld [vmem:[%s3 + $0x10] sm:$0xff]
    %v148 = vld [vmem:[%s3 + $0x18] sm:$0xff]
    %v149 = vld [vmem:[%s3 + $0x20] sm:$0xff]
    %v150 = vld [vmem:[%s3 + $0x28] sm:$0xff]
    %v151 = vld [vmem:[%s3 + $0x30] sm:$0xff]
    %v152 = vld [vmem:[%s3 + $0x38] sm:$0xff]
    %v153 = vld [vmem:[%s3 + $0x40] sm:$0xff]
    %vm154 = vcmask 64512
    %v156 = vsel %vm154, %v22, 0
    %158 = vmatprep.subr.mxu0 0.0
    %159 = vmatpush1.msra.mxu0 %v153
    %160 = vmatprep.subr.mxu0 0.0
    %161 = vmatpush1.msra.mxu0 0.0
    %162 = vmatprep.subr.mxu0 0.0
    %163 = vmatpush1.msra.mxu0 0.0
    %164 = vmatprep.subr.mxu0 0.0
    %165 = vmatpush1.msra.mxu0 0.0
    %166 = vmatprep.subr.mxu0 0.0
    %167 = vmatpush1.msra.mxu0 0.0
    %168 = vmatprep.subr.mxu0 0.0
    %169 = vmatpush1.msra.mxu0 0.0
    %170 = vmatprep.subr.mxu0 0.0
    %171 = vmatpush1.msra.mxu0 0.0
    %172 = vmatprep.subr.mxu0 0.0
    %173 = vmatpush1.msra.mxu0 0.0
    %174 = vmatprep.subr.mxu0 0.0
    %175 = vmatpush1.msra.mxu0 0.0
    %176 = vmatprep.subr.mxu0 0.0
    %177 = vmatpush1.msra.mxu0 0.0
    %178 = vmatprep.subr.mxu0 0.0
    %179 = vmatpush1.msra.mxu0 0.0
    %180 = vmatprep.subr.mxu0 0.0
    %181 = vmatpush1.msra.mxu0 0.0
    %182 = vmatprep.subr.mxu0 0.0
    %183 = vmatpush1.msra.mxu0 0.0
    %184 = vmatprep.subr.mxu0 0.0
    %185 = vmatpush1.msra.mxu0 0.0
    %186 = vmatprep.subr.mxu0 0.0
    %187 = vmatpush1.msra.mxu0 0.0
    %188 = vmatprep.subr.mxu0 0.0
    %189 = vmatpush1.msra.mxu0 0.0
    %190 = vmatprep.subr.mxu0 0.0
    %191 = vmatpush1.msra.mxu0 0.0
    %192 = vmatprep.subr.mxu0 0.0
    %193 = vmatpush1.msra.mxu0 0.0
    %194 = vmatprep.subr.mxu0 0.0
    %195 = vmatpush1.msra.mxu0 0.0
    %196 = vmatprep.subr.mxu0 0.0
    %197 = vmatpush1.msra.mxu0 0.0
    %198 = vmatprep.subr.mxu0 0.0
    %199 = vmatpush1.msra.mxu0 0.0
    %200 = vmatprep.subr.mxu0 0.0
    %201 = vmatpush1.msra.mxu0 0.0
    %202 = vmatprep.subr.mxu0 0.0
    %203 = vmatpush1.msra.mxu0 0.0
    %204 = vmatprep.subr.mxu0 0.0
    %205 = vmatpush1.msra.mxu0 0.0
    %206 = vmatprep.subr.mxu0 0.0
    %207 = vmatpush1.msra.mxu0 0.0
    %208 = vmatprep.subr.mxu0 0.0
    %209 = vmatpush1.msra.mxu0 0.0
    %210 = vmatprep.subr.mxu0 0.0
    %211 = vmatpush1.msra.mxu0 0.0
    %212 = vmatprep.subr.mxu0 0.0
    %213 = vmatpush1.msra.mxu0 0.0
    %214 = vmatprep.subr.mxu0 0.0
    %215 = vmatpush1.msra.mxu0 0.0
    %216 = vmatprep.subr.mxu0 0.0
    %217 = vmatpush1.msra.mxu0 0.0
    %218 = vmatprep.subr.mxu0 0.0
    %219 = vmatpush1.msra.mxu0 0.0
    %220 = vmatprep.subr.mxu0 0.0
    %221 = vmatpush1.msra.mxu0 0.0
    %222 = vmatprep.mubr.f32.mxu0 0.0
    %223 = vmatmul.mubr.f32.gmra.mrb[0].mxu0 %v156
    %v224 = vpop.f32.mrb[0].mxu0
    %v225 = vadd.f32 0.0, %v224
    %v226 = vpop.f32.mrb[0].mxu0
    %227 = vdwg.mxu0
    %v229 = vsel %vm112, %v144, 0
    %231 = vmatprep.subr.mxu0 0.0
    %232 = vmatpush1.msra.mxu0 %v145
    %233 = vmatprep.subr.mxu0 0.0
    %234 = vmatpush1.msra.mxu0 %v146
    %235 = vmatprep.subr.mxu0 0.0
    %236 = vmatpush1.msra.mxu0 %v147
    %237 = vmatprep.subr.mxu0 0.0
    %238 = vmatpush1.msra.mxu0 %v148
    %239 = vmatprep.subr.mxu0 0.0
    %240 = vmatpush1.msra.mxu0 %v149
    %241 = vmatprep.subr.mxu0 0.0
    %242 = vmatpush1.msra.mxu0 %v150
    %243 = vmatprep.subr.mxu0 0.0
    %244 = vmatpush1.msra.mxu0 %v151
    %245 = vmatprep.subr.mxu0 0.0
    %246 = vmatpush1.msra.mxu0 %v152
    %247 = vmatprep.subr.mxu0 0.0
    %248 = vmatpush1.msra.mxu0 0.0
    %249 = vmatprep.subr.mxu0 0.0
    %250 = vmatpush1.msra.mxu0 0.0
    %251 = vmatprep.subr.mxu0 0.0
    %252 = vmatpush1.msra.mxu0 0.0
    %253 = vmatprep.subr.mxu0 0.0
    %254 = vmatpush1.msra.mxu0 0.0
    %255 = vmatprep.subr.mxu0 0.0
    %256 = vmatpush1.msra.mxu0 0.0
    %257 = vmatprep.subr.mxu0 0.0
    %258 = vmatpush1.msra.mxu0 0.0
    %259 = vmatprep.subr.mxu0 0.0
    %260 = vmatpush1.msra.mxu0 0.0
    %261 = vmatprep.subr.mxu0 0.0
    %262 = vmatpush1.msra.mxu0 0.0
    %263 = vmatprep.subr.mxu0 0.0
    %264 = vmatpush1.msra.mxu0 0.0
    %265 = vmatprep.subr.mxu0 0.0
    %266 = vmatpush1.msra.mxu0 0.0
    %267 = vmatprep.subr.mxu0 0.0
    %268 = vmatpush1.msra.mxu0 0.0
    %269 = vmatprep.subr.mxu0 0.0
    %270 = vmatpush1.msra.mxu0 0.0
    %271 = vmatprep.subr.mxu0 0.0
    %272 = vmatpush1.msra.mxu0 0.0
    %273 = vmatprep.subr.mxu0 0.0
    %274 = vmatpush1.msra.mxu0 0.0
    %275 = vmatprep.subr.mxu0 0.0
    %276 = vmatpush1.msra.mxu0 0.0
    %277 = vmatprep.subr.mxu0 0.0
    %278 = vmatpush1.msra.mxu0 0.0
    %279 = vmatprep.subr.mxu0 0.0
    %280 = vmatpush1.msra.mxu0 0.0
    %281 = vmatprep.subr.mxu0 0.0
    %282 = vmatpush1.msra.mxu0 0.0
    %283 = vmatprep.subr.mxu0 0.0
    %284 = vmatpush1.msra.mxu0 0.0
    %285 = vmatprep.subr.mxu0 0.0
    %286 = vmatpush1.msra.mxu0 0.0
    %287 = vmatprep.subr.mxu0 0.0
    %288 = vmatpush1.msra.mxu0 0.0
    %289 = vmatprep.subr.mxu0 0.0
    %290 = vmatpush1.msra.mxu0 0.0
    %291 = vmatprep.subr.mxu0 0.0
    %292 = vmatpush1.msra.mxu0 0.0
    %293 = vmatprep.subr.mxu0 0.0
    %294 = vmatpush1.msra.mxu0 0.0
    %295 = vmatprep.mubr.f32.mxu0 0.0
    %296 = vmatmul.mubr.f32.gmra.mrb[0].mxu0 %v229
    %v297 = vpop.f32.mrb[0].mxu0
    %v298 = vadd.f32 %v225, %v297
    %v299 = vpop.f32.mrb[0].mxu0
    %300 = vdwg.mxu0
    %v301 = vlaneseq
    %v302 = vshrl.u32 %v301, 7
    %v303 = vsub.s32 0, %v302
    %v304 = vrot.slane %v26, %v303
    %v305 = vadd.f32 %v298, %v304
    %v306 = vmax.f32 %v305, 0.0
    %308 = vset.pattern.permute.xlu0 0
    %309 = vperm.xlu0 %308, %v28
    %v310 = vpop.permute.xlu0 %309
    %vm312 = vcmask 392192
    %v314 = vsel %vm312, %v27, 0
    %v317 = vsel %vm312, %v306, 0
    %319 = vmatprep.subr.mxu0 0.0
    %320 = vmatpush1.xpose.msra.mxu0 %v317
    %321 = vmatprep.subr.mxu0 0.0
    %322 = vmatpush1.xpose.msra.mxu0 0.0
    %323 = vmatprep.subr.mxu0 0.0
    %324 = vmatpush1.xpose.msra.mxu0 0.0
    %325 = vmatprep.subr.mxu0 0.0
    %326 = vmatpush1.xpose.msra.mxu0 0.0
    %327 = vmatprep.subr.mxu0 0.0
    %328 = vmatpush1.xpose.msra.mxu0 0.0
    %329 = vmatprep.subr.mxu0 0.0
    %330 = vmatpush1.xpose.msra.mxu0 0.0
    %331 = vmatprep.subr.mxu0 0.0
    %332 = vmatpush1.xpose.msra.mxu0 0.0
    %333 = vmatprep.subr.mxu0 0.0
    %334 = vmatpush1.xpose.msra.mxu0 0.0
    %335 = vmatprep.subr.mxu0 0.0
    %336 = vmatpush1.xpose.msra.mxu0 0.0
    %337 = vmatprep.subr.mxu0 0.0
    %338 = vmatpush1.xpose.msra.mxu0 0.0
    %339 = vmatprep.subr.mxu0 0.0
    %340 = vmatpush1.xpose.msra.mxu0 0.0
    %341 = vmatprep.subr.mxu0 0.0
    %342 = vmatpush1.xpose.msra.mxu0 0.0
    %343 = vmatprep.subr.mxu0 0.0
    %344 = vmatpush1.xpose.msra.mxu0 0.0
    %345 = vmatprep.subr.mxu0 0.0
    %346 = vmatpush1.xpose.msra.mxu0 0.0
    %347 = vmatprep.subr.mxu0 0.0
    %348 = vmatpush1.xpose.msra.mxu0 0.0
    %349 = vmatprep.subr.mxu0 0.0
    %350 = vmatpush1.xpose.msra.mxu0 0.0
    %351 = vmatprep.subr.mxu0 0.0
    %352 = vmatpush1.xpose.msra.mxu0 0.0
    %353 = vmatprep.subr.mxu0 0.0
    %354 = vmatpush1.xpose.msra.mxu0 0.0
    %355 = vmatprep.subr.mxu0 0.0
    %356 = vmatpush1.xpose.msra.mxu0 0.0
    %357 = vmatprep.subr.mxu0 0.0
    %358 = vmatpush1.xpose.msra.mxu0 0.0
    %359 = vmatprep.subr.mxu0 0.0
    %360 = vmatpush1.xpose.msra.mxu0 0.0
    %361 = vmatprep.subr.mxu0 0.0
    %362 = vmatpush1.xpose.msra.mxu0 0.0
    %363 = vmatprep.subr.mxu0 0.0
    %364 = vmatpush1.xpose.msra.mxu0 0.0
    %365 = vmatprep.subr.mxu0 0.0
    %366 = vmatpush1.xpose.msra.mxu0 0.0
    %367 = vmatprep.subr.mxu0 0.0
    %368 = vmatpush1.xpose.msra.mxu0 0.0
    %369 = vmatprep.subr.mxu0 0.0
    %370 = vmatpush1.xpose.msra.mxu0 0.0
    %371 = vmatprep.subr.mxu0 0.0
    %372 = vmatpush1.xpose.msra.mxu0 0.0
    %373 = vmatprep.subr.mxu0 0.0
    %374 = vmatpush1.xpose.msra.mxu0 0.0
    %375 = vmatprep.subr.mxu0 0.0
    %376 = vmatpush1.xpose.msra.mxu0 0.0
    %377 = vmatprep.subr.mxu0 0.0
    %378 = vmatpush1.xpose.msra.mxu0 0.0
    %379 = vmatprep.subr.mxu0 0.0
    %380 = vmatpush1.xpose.msra.mxu0 0.0
    %381 = vmatprep.subr.mxu0 0.0
    %382 = vmatpush1.xpose.msra.mxu0 0.0
    %383 = vmatprep.mubr.f32.mxu0 0.0
    %384 = vmatmul.mubr.f32.gmra.mrb[0].mxu0 %v314
    %v385 = vpop.f32.mrb[0].mxu0
    %v386 = vadd.f32 %v310, %v385
    %v387 = vpop.f32.mrb[0].mxu0
    %388 = vdwg.mxu0
    %vm389 = vcmask 57344
    %390 = vst.msk [vmem:[#allocation2] sm:$0x1] %vm389, %v386
    // Predicated region
    $region22: #{critic_forward.1} parent=1 // pred_check
      _
    $region23: #{critic_forward.1} parent=1 // pred_check_branch
      %392 = sbr.rel (0) target = $region25
    $region24: #{critic_forward.1} parent=1 // pred_region
      %s394 = ssub.s32 16, 16
      %395 = vsyncadd [#allocation3], %s394
      %s397 = sshll.u32 [#allocation2], 4
      %s398 = int_to_ptr.vmem [resolvable:$true] %s397
      %400 = dma.vmem_to_hbm [thread:$0]  %s398, 16, %s5, [#allocation3]
    $region25: #{critic_forward.1} parent=1 // pred_fallthru
      _
    // Predicated region
    $region26: #{critic_forward.1} parent=1 // pred_check
      _
    $region27: #{critic_forward.1} parent=1 // pred_check_branch
      %402 = sbr.rel (0) target = $region29
    $region28: #{critic_forward.1} parent=1 // pred_region
      %403 = dma.done [#allocation3], 16
    $region29: #{critic_forward.1} parent=1 // pred_fallthru
      _
    %404 = vsyncpa [#allocation3], 1

</llo_original>
